<compile_context>
chip_gen: v7x
topology: tpu7x:2x2x1
jax: 0.10.0
libtpu: 0.0.40
codegen_flags: <defaults>
</compile_context>

<pallas_src>
import functools

import jax
import jax.numpy as jnp
from jax.experimental import pallas as pl
from jax.experimental.pallas import tpu as pltpu


def _geodesic_kernel(x_ref, y_ref, dist_ref, viol_ref, *, abs_curv, eps_acosh, atol, rtol):
    """Per-row hyperbolic geodesic distance + allclose-violation diagnostic.

    x_ref, y_ref : (R, D) blocks (native dtype, upcast to f32 in-kernel)
    dist_ref     : (R, 1) f32  -- acosh distance per row
    viol_ref     : (R, 1) f32  -- per-row max of |x_proj - y_proj| - (atol + rtol*|y_proj|)
                                  (global max <= 0  <=>  torch.allclose(x_proj, y_proj))
    """
    x = x_ref[...].astype(jnp.float32)
    y = y_ref[...].astype(jnp.float32)

    # Full-width products + lane reductions. Spatial-only sums are recovered by
    # subtracting the (discarded) raw time-lane contribution instead of masking the
    # whole tile with iota/where selects.
    sx = jnp.sum(x * x, axis=-1, keepdims=True)
    sy = jnp.sum(y * y, axis=-1, keepdims=True)
    sxy = jnp.sum(x * y, axis=-1, keepdims=True)

    x0r = x[:, 0:1]  # raw time components (replaced by the projection)
    y0r = y[:, 0:1]
    sx = jnp.maximum(sx - x0r * x0r, 0.0)   # ||spatial_x||^2
    sy = jnp.maximum(sy - y0r * y0r, 0.0)   # ||spatial_y||^2
    sxy = sxy - x0r * y0r                   # <spatial_x, spatial_y>

    # project_to_hyperboloid time components: sqrt(1 + |K| * ||spatial||^2)
    x0 = jnp.sqrt(1.0 + abs_curv * sx)
    y0 = jnp.sqrt(1.0 + abs_curv * sy)

    # inner = -<x_proj, y_proj>_M = x0*y0 - <spatial_x, spatial_y>
    # Stable acosh: with t = clamp(inner - 1, eps),
    #   acosh(1 + t) = log(1 + t + sqrt(t * (t + 2)))
    t = jnp.maximum(x0 * y0 - sxy - 1.0, eps_acosh)
    dist_ref[...] = jnp.log(1.0 + (t + jnp.sqrt(t * (t + 2.0))))

    # torch.allclose(x_proj, y_proj, atol, rtol) violation, per row.
    # Spatial lanes use the raw coordinates; the time lane is recomputed from x0/y0.
    lane = jax.lax.broadcasted_iota(jnp.int32, x.shape, dimension=1)
    viol_sp = jnp.abs(x - y) - (atol + rtol * jnp.abs(y))
    viol_sp = jnp.where(lane > 0, viol_sp, -jnp.inf)
    viol_sp = jnp.max(viol_sp, axis=-1, keepdims=True)
    viol_t = jnp.abs(x0 - y0) - (atol + rtol * y0)
    viol_ref[...] = jnp.maximum(viol_sp, viol_t)


def _round_up(v, m):
    return ((v + m - 1) // m) * m


def hyperbolic_geodesic_distance(x, y, *, curvature=-1.0, max_block_rows=2048):
    """Pallas-backed GeometricStructures.compute_geodesic_distance (hyperbolic manifold)."""
    assert x.shape == y.shape
    lead_shape = x.shape[:-1]
    d = x.shape[-1]

    # Keep inputs in their original dtype through the DMA (halves HBM read traffic for
    # bf16 inputs); the kernel upcasts to f32 for the math.
    xf = x.reshape(-1, d)
    yf = y.reshape(-1, d)
    n = xf.shape[0]

    itemsize = jnp.dtype(x.dtype).itemsize
    row_align = max(8, 32 // max(1, itemsize))  # sublane tiling per dtype

    # Block sizing: as large as comfortably fits (amortizes per-grid-step overhead),
    # capped so 2 inputs x 2 pipeline buffers stay well under the default scoped-VMEM
    # limit, and keeping >=2 grid steps when the problem allows (v7x megacore sharding).
    vmem_cap_rows = max(row_align, (8 * 1024 * 1024) // (4 * d * itemsize))
    max_rows = max(row_align, min(max_block_rows, _round_up(vmem_cap_rows, row_align)))

    n_al = _round_up(max(n, 1), row_align)
    num_blocks = max(-(-n_al // max_rows), 2 if n_al >= 2 * row_align else 1)
    block_rows = _round_up(-(-n_al // num_blocks), row_align)
    n_pad = num_blocks * block_rows

    if n_pad != n:
        xf = jnp.pad(xf, ((0, n_pad - n), (0, 0)))
        yf = jnp.pad(yf, ((0, n_pad - n), (0, 0)))

    kernel = functools.partial(
        _geodesic_kernel,
        abs_curv=abs(float(curvature)),
        eps_acosh=1e-7,
        atol=1e-7,
        rtol=1e-5,
    )

    dist, viol = pl.pallas_call(
        kernel,
        out_shape=(
            jax.ShapeDtypeStruct((n_pad, 1), jnp.float32),
            jax.ShapeDtypeStruct((n_pad, 1), jnp.float32),
        ),
        grid_spec=pltpu.PrefetchScalarGridSpec(
            num_scalar_prefetch=0,
            grid=(num_blocks,),
            in_specs=[
                pl.BlockSpec((block_rows, d), lambda i: (i, 0)),
                pl.BlockSpec((block_rows, d), lambda i: (i, 0)),
            ],
            out_specs=[
                pl.BlockSpec((block_rows, 1), lambda i: (i, 0)),
                pl.BlockSpec((block_rows, 1), lambda i: (i, 0)),
            ],
        ),
        compiler_params=pltpu.CompilerParams(dimension_semantics=("parallel",)),
    )(xf, yf)

    dist = dist[:n, 0]
    viol = viol[:n, 0]

    # torch semantics: if torch.allclose(x_proj, y_proj, atol=1e-7): zero the WHOLE tensor.
    all_close = jnp.max(viol) <= 0.0
    dist = jnp.where(all_close, jnp.zeros_like(dist), dist)
    return dist.reshape(lead_shape)


class GeometricStructures:
    """JAX/Pallas mirror of the PyTorch GeometricStructures module (forward path)."""

    def __init__(self, dim, num_heads=8, manifold_type="hyperbolic",
                 curvature=-1.0, parallel_transport_method="schild"):
        self.dim = dim
        self.num_heads = num_heads
        self.manifold_type = manifold_type
        self.curvature = curvature
        self.parallel_transport_method = parallel_transport_method
        # nn.Parameter mirrors (unused by the default forward path).
        self.metric = jnp.eye(dim, dtype=jnp.float32)
        self.connection = jnp.zeros((dim, dim, dim), dtype=jnp.float32)
        self.curvature_tensor = jnp.zeros((dim, dim, dim, dim), dtype=jnp.float32)

    def compute_geodesic_distance(self, x, y):
        if self.manifold_type == "hyperbolic":
            return hyperbolic_geodesic_distance(x, y, curvature=self.curvature)
        return jnp.linalg.norm(y - x, axis=-1)

    def forward(self, x, y, v=None, return_diagnostics=False):
        results = {"distance": self.compute_geodesic_distance(x, y)}
        # TODO(synk): return_diagnostics sectional-curvature path (tiny scalar einsum over
        # curvature_tensor / metric) and the exp/log/parallel-transport maps are off the
        # default forward path and are not implemented as Pallas kernels.
        return results

    __call__ = forward


def _reference_distance(x, y, curvature=-1.0):
    """Pure-jnp mirror of the torch reference, for correctness checking."""
    K = abs(curvature)
    def proj(p):
        sp = p[..., 1:]
        t = jnp.sqrt(1.0 + K * jnp.sum(sp * sp, axis=-1, keepdims=True))
        return jnp.concatenate([t, sp], axis=-1)
    xp, yp = proj(x.astype(jnp.float32)), proj(y.astype(jnp.float32))
    inner = xp[..., 0] * yp[..., 0] - jnp.sum(xp[..., 1:] * yp[..., 1:], axis=-1)
    inner = jnp.maximum(inner, 1.0 + 1e-7)
    dist = jnp.arccosh(inner)
    close = jnp.all(jnp.abs(xp - yp) <= 1e-7 + 1e-5 * jnp.abs(yp))
    return jnp.where(close, jnp.zeros_like(dist), dist)


if __name__ == "__main__":
    key = jax.random.PRNGKey(0)
    k1, k2, k3, k4 = jax.random.split(key, 4)

    batch, seq, dim = 2, 8, 32
    x = jax.random.normal(k1, (batch, seq, dim), dtype=jnp.float32)
    y = jax.random.normal(k2, (batch, seq, dim), dtype=jnp.float32)

    gs = GeometricStructures(dim=dim, num_heads=8, manifold_type="hyperbolic", curvature=-1.0)
    out = gs.forward(x, y)
    dist = jax.block_until_ready(out["distance"])

    assert dist.shape == (batch, seq), dist.shape
    assert bool(jnp.all(jnp.isfinite(dist)))

    # correctness vs. pure-JAX reference
    ref = _reference_distance(x, y)
    assert bool(jnp.all(jnp.abs(dist - ref) <= 1e-4 + 5e-3 * jnp.abs(ref)))

    # exercise padding / multi-block path (n = 18 -> padded)
    x2 = jax.random.normal(k3, (2, 9, dim), dtype=jnp.float32)
    y2 = jax.random.normal(k4, (2, 9, dim), dtype=jnp.float32)
    d2 = jax.block_until_ready(gs.forward(x2, y2)["distance"])
    r2 = _reference_distance(x2, y2)
    assert d2.shape == (2, 9)
    assert bool(jnp.all(jnp.abs(d2 - r2) <= 1e-4 + 5e-3 * jnp.abs(r2)))

    # sanity: distance from a point to itself must be 0 (tensor-wide allclose branch)
    self_dist = jax.block_until_ready(gs.forward(x, x)["distance"])
    assert bool(jnp.all(self_dist == 0.0))

    print("KERNEL_OK")
</pallas_src>

<mosaic_0001>
module attributes {stable_mosaic.version = 11 : i64} {
  func.func @_geodesic_kernel(%arg0: i32, %arg1: memref<8x32xf32, #tpu.memory_space<vmem>>, %arg2: memref<8x32xf32, #tpu.memory_space<vmem>>, %arg3: memref<8x1xf32, #tpu.memory_space<vmem>>, %arg4: memref<8x1xf32, #tpu.memory_space<vmem>>) attributes {dimension_semantics = [#tpu.dimension_semantics<parallel>], iteration_bounds = array<i64: 2>, scalar_prefetch = 0 : i64, scratch_operands = 0 : i64, tpu.core_type = #tpu.core_type<tc>, window_params = [{transform_indices = @transform_0, window_bounds = array<i64: 8, 32>}, {transform_indices = @transform_1, window_bounds = array<i64: 8, 32>}, {transform_indices = @transform_2, window_bounds = array<i64: 8, 1>}, {transform_indices = @transform_3, window_bounds = array<i64: 8, 1>}]} {
    %c0 = arith.constant 0 : index
    %c0_0 = arith.constant 0 : index
    %0 = vector.load %arg1[%c0, %c0_0] : memref<8x32xf32, #tpu.memory_space<vmem>>, vector<8x32xf32>
    %c0_1 = arith.constant 0 : index
    %c0_2 = arith.constant 0 : index
    %1 = vector.load %arg2[%c0_1, %c0_2] : memref<8x32xf32, #tpu.memory_space<vmem>>, vector<8x32xf32>
    %2 = arith.mulf %0, %0 : vector<8x32xf32>
    %cst = arith.constant dense<0.000000e+00> : vector<8xf32>
    %3 = vector.multi_reduction <add>, %2, %cst [1] : vector<8x32xf32> to vector<8xf32>
    %4 = vector.shape_cast %3 : vector<8xf32> to vector<8x1xf32>
    %5 = arith.mulf %1, %1 : vector<8x32xf32>
    %cst_3 = arith.constant dense<0.000000e+00> : vector<8xf32>
    %6 = vector.multi_reduction <add>, %5, %cst_3 [1] : vector<8x32xf32> to vector<8xf32>
    %7 = vector.shape_cast %6 : vector<8xf32> to vector<8x1xf32>
    %8 = arith.mulf %0, %1 : vector<8x32xf32>
    %cst_4 = arith.constant dense<0.000000e+00> : vector<8xf32>
    %9 = vector.multi_reduction <add>, %8, %cst_4 [1] : vector<8x32xf32> to vector<8xf32>
    %10 = vector.shape_cast %9 : vector<8xf32> to vector<8x1xf32>
    %11 = vector.extract_strided_slice %0 {offsets = [0, 0], sizes = [8, 1], strides = [1, 1]} : vector<8x32xf32> to vector<8x1xf32>
    %12 = vector.extract_strided_slice %1 {offsets = [0, 0], sizes = [8, 1], strides = [1, 1]} : vector<8x32xf32> to vector<8x1xf32>
    %13 = arith.mulf %11, %11 : vector<8x1xf32>
    %14 = arith.subf %4, %13 : vector<8x1xf32>
    %cst_5 = arith.constant 0.000000e+00 : f32
    %15 = vector.broadcast %cst_5 : f32 to vector<8x1xf32>
    %16 = arith.maximumf %14, %15 : vector<8x1xf32>
    %17 = arith.mulf %12, %12 : vector<8x1xf32>
    %18 = arith.subf %7, %17 : vector<8x1xf32>
    %cst_6 = arith.constant 0.000000e+00 : f32
    %19 = vector.broadcast %cst_6 : f32 to vector<8x1xf32>
    %20 = arith.maximumf %18, %19 : vector<8x1xf32>
    %21 = arith.mulf %11, %12 : vector<8x1xf32>
    %22 = arith.subf %10, %21 : vector<8x1xf32>
    %cst_7 = arith.constant 1.000000e+00 : f32
    %23 = vector.broadcast %cst_7 : f32 to vector<8x1xf32>
    %24 = arith.mulf %23, %16 : vector<8x1xf32>
    %cst_8 = arith.constant 1.000000e+00 : f32
    %25 = vector.broadcast %cst_8 : f32 to vector<8x1xf32>
    %26 = arith.addf %25, %24 : vector<8x1xf32>
    %27 = math.sqrt %26 : vector<8x1xf32>
    %cst_9 = arith.constant 1.000000e+00 : f32
    %28 = vector.broadcast %cst_9 : f32 to vector<8x1xf32>
    %29 = arith.mulf %28, %20 : vector<8x1xf32>
    %cst_10 = arith.constant 1.000000e+00 : f32
    %30 = vector.broadcast %cst_10 : f32 to vector<8x1xf32>
    %31 = arith.addf %30, %29 : vector<8x1xf32>
    %32 = math.sqrt %31 : vector<8x1xf32>
    %33 = arith.mulf %27, %32 : vector<8x1xf32>
    %34 = arith.subf %33, %22 : vector<8x1xf32>
    %cst_11 = arith.constant 1.000000e+00 : f32
    %35 = vector.broadcast %cst_11 : f32 to vector<8x1xf32>
    %36 = arith.subf %34, %35 : vector<8x1xf32>
    %cst_12 = arith.constant 1.000000e-07 : f32
    %37 = vector.broadcast %cst_12 : f32 to vector<8x1xf32>
    %38 = arith.maximumf %36, %37 : vector<8x1xf32>
    %cst_13 = arith.constant 2.000000e+00 : f32
    %39 = vector.broadcast %cst_13 : f32 to vector<8x1xf32>
    %40 = arith.addf %38, %39 : vector<8x1xf32>
    %41 = arith.mulf %38, %40 : vector<8x1xf32>
    %42 = math.sqrt %41 : vector<8x1xf32>
    %43 = arith.addf %38, %42 : vector<8x1xf32>
    %cst_14 = arith.constant 1.000000e+00 : f32
    %44 = vector.broadcast %cst_14 : f32 to vector<8x1xf32>
    %45 = arith.addf %44, %43 : vector<8x1xf32>
    %46 = math.log %45 : vector<8x1xf32>
    %c0_15 = arith.constant 0 : index
    %c0_16 = arith.constant 0 : index
    %47 = vector.load %arg3[%c0_15, %c0_16] : memref<8x1xf32, #tpu.memory_space<vmem>>, vector<8x1xf32>
    tpu.vector_store %arg3[%c0_15, %c0_16], %46 {strides = array<i32>} : memref<8x1xf32, #tpu.memory_space<vmem>>, vector<8x1xf32>,
    %48 = tpu.iota {dimensions = array<i32: 1>} : vector<8x32xi32>
    %49 = arith.subf %0, %1 : vector<8x32xf32>
    %50 = math.absf %49 : vector<8x32xf32>
    %51 = math.absf %1 : vector<8x32xf32>
    %cst_17 = arith.constant 9.99999974E-6 : f32
    %52 = vector.broadcast %cst_17 : f32 to vector<8x32xf32>
    %53 = arith.mulf %52, %51 : vector<8x32xf32>
    %cst_18 = arith.constant 1.000000e-07 : f32
    %54 = vector.broadcast %cst_18 : f32 to vector<8x32xf32>
    %55 = arith.addf %54, %53 : vector<8x32xf32>
    %56 = arith.subf %50, %55 : vector<8x32xf32>
    %c0_i32 = arith.constant 0 : i32
    %57 = vector.broadcast %c0_i32 : i32 to vector<8x32xi32>
    %58 = arith.cmpi sgt, %48, %57 : vector<8x32xi32>
    %cst_19 = arith.constant 0xFF800000 : f32
    %59 = vector.broadcast %cst_19 : f32 to vector<8x32xf32>
    %60 = arith.select %58, %56, %59 : vector<8x32xi1>, vector<8x32xf32>
    %cst_20 = arith.constant dense<0xFF800000> : vector<8xf32>
    %61 = vector.multi_reduction <maximumf>, %60, %cst_20 [1] : vector<8x32xf32> to vector<8xf32>
    %62 = vector.shape_cast %61 : vector<8xf32> to vector<8x1xf32>
    %63 = arith.subf %27, %32 : vector<8x1xf32>
    %64 = math.absf %63 : vector<8x1xf32>
    %cst_21 = arith.constant 9.99999974E-6 : f32
    %65 = vector.broadcast %cst_21 : f32 to vector<8x1xf32>
    %66 = arith.mulf %65, %32 : vector<8x1xf32>
    %cst_22 = arith.constant 1.000000e-07 : f32
    %67 = vector.broadcast %cst_22 : f32 to vector<8x1xf32>
    %68 = arith.addf %67, %66 : vector<8x1xf32>
    %69 = arith.subf %64, %68 : vector<8x1xf32>
    %70 = arith.maximumf %62, %69 : vector<8x1xf32>
    %c0_23 = arith.constant 0 : index
    %c0_24 = arith.constant 0 : index
    %71 = vector.load %arg4[%c0_23, %c0_24] : memref<8x1xf32, #tpu.memory_space<vmem>>, vector<8x1xf32>
    tpu.vector_store %arg4[%c0_23, %c0_24], %70 {strides = array<i32>} : memref<8x1xf32, #tpu.memory_space<vmem>>, vector<8x1xf32>,
    return
  }
  func.func @transform_0(%arg0: i32) -> (i32, i32) {
    %c0_i32 = arith.constant 0 : i32
    %c0_i32_0 = arith.constant 0 : i32
    return %arg0, %c0_i32 : i32, i32
  }
  func.func @transform_1(%arg0: i32) -> (i32, i32) {
    %c0_i32 = arith.constant 0 : i32
    %c0_i32_0 = arith.constant 0 : i32
    return %arg0, %c0_i32 : i32, i32
  }
  func.func @transform_2(%arg0: i32) -> (i32, i32) {
    %c0_i32 = arith.constant 0 : i32
    %c0_i32_0 = arith.constant 0 : i32
    return %arg0, %c0_i32 : i32, i32
  }
  func.func @transform_3(%arg0: i32) -> (i32, i32) {
    %c0_i32 = arith.constant 0 : i32
    %c0_i32_0 = arith.constant 0 : i32
    return %arg0, %c0_i32 : i32, i32
  }
}

</mosaic_0001>

<llo_original>
// kernel: tpu_custom_call.1
$region0: #{tpu_custom_call.1}
  #allocation0 [shape = 'u32[]', space=smem, size = 0x4, offset = 0x4, fixed_abs, tag = 'smem constant byte address 0x4 - core index']
  #allocation1 [shape = 'u32[144,128]{1,0:T(1,128)}', space=vmem, size = 0x12000, scoped, tag = 'internal scratch']
  %s0 = inlined_call_operand.hbm [shape: f32[16,32], index: 0, kind: input, shape index: {}]
  %s1 = inlined_call_operand.hbm [shape: f32[16,32], index: 1, kind: input, shape index: {}]
  %s2 = inlined_call_operand.vmem [shape: f32[16,1], index: 2, kind: output, shape index: {0}]
  %s3 = inlined_call_operand.vmem [shape: f32[16,1], index: 3, kind: output, shape index: {1}]
  %4 = xla_tuple %s2, %s3
  %s5 = sld [smem:[#allocation0]]
  $region57: #{tpu_custom_call.1} parent=0
    _
  %s7 = ssub.s32 1, %s5
  %s8 = scalar_select 0, %s7, %s5
  $region1: #{tpu_custom_call.1} parent=0
    #allocation2 [shape = 'u8[8192]{0}', space=vmem, size = 0x2000, scoped, tag = 'input window, operand 0']
    #allocation3 [shape = 's32[2]{0}', space=sflag, size = 0x8, scoped, tag = 'scoped memory for tpu_custom_call.1']
    #allocation4 [shape = 'u8[8192]{0}', space=vmem, size = 0x2000, scoped, tag = 'input window, operand 1']
    #allocation5 [shape = 's32[2]{0}', space=sflag, size = 0x8, scoped, tag = 'scoped memory for tpu_custom_call.1']
    %9 = vsyncpa [#allocation3], 0
    %s10 = scalar_lea.sflag [#allocation3], 1
    %11 = vsyncpa %s10, 0
    %12 = vsyncpa [#allocation5], 0
    %s13 = scalar_lea.sflag [#allocation5], 1
    %14 = vsyncpa %s13, 0
    loop: start=0, step=1, limit=4
    $region2: #{tpu_custom_call.1} parent=1 // loop_pre_header
      _
    $region3: #{tpu_custom_call.1} parent=1 // loop_header
      %s16 = sphi 0, %s20
      %p17 = scmp.ge.s32.totalorder %s16, 4
      %s26 = sphi 0, %s28
      %s29 = sphi 0, %s26
      %s30 = sphi 0, %s29
      %s46 = sphi 0, %s30
      %s52 = sphi 0, %s54
      %s55 = sphi 0, %s52
      %s56 = sphi 0, %s55
      %s72 = sphi 0, %s56
      %s78 = sphi 0, %s80
      %s81 = sphi 0, %s78
      %s82 = sphi 0, %s81
      %s98 = sphi 0, %s82
      %s104 = sphi 0, %s106
      %s107 = sphi 0, %s104
      %s108 = sphi 0, %s107
      %s124 = sphi 0, %s108
    $region4: #{tpu_custom_call.1} parent=1 // loop_header_branch
      %19 = sbr.rel (%p17) target = $region8
    $region5: #{tpu_custom_call.1} parent=1 // loop_body
      %s21 = ssub.s32 %s16, 1
      %s22 = ssub.s32 %s16, 2
      %s23 = sadd.s32 %s16, 1
      %s24 = ssub.s32 %s16, %s23
      %p25 = scmp.eq.s32.totalorder %s24, 0
      %s27 = sadd.s32 %s26, 1
      %s28 = scalar_select %p25, %s26, %s27
      %p31 = pneg %p25
      %p32 = scmp.eq.s32.totalorder %s16, 1
      %p33 = por %p31, %p32
      %p34 = scmp.ne.s32.totalorder %s26, %s29
      %p35 = scmp.eq.s32.totalorder %s16, 0
      %p36 = por %p34, %p35
      %p37 = scmp.ne.s32.totalorder %s26, %s29
      %p38 = scmp.eq.s32.totalorder %s21, 1
      %p39 = por %p37, %p38
      %p40 = scmp.ne.s32.totalorder %s29, %s30
      %p41 = scmp.eq.s32.totalorder %s21, 0
      %p42 = por %p40, %p41
      %p43 = scmp.ne.s32.totalorder %s29, %s30
      %p44 = scmp.eq.s32.totalorder %s22, 1
      %p45 = por %p43, %p44
      %p47 = scmp.ne.s32.totalorder %s30, %s46
      %p48 = scmp.eq.s32.totalorder %s22, 0
      %p49 = por %p47, %p48
      %s50 = ssub.s32 %s16, %s23
      %p51 = scmp.eq.s32.totalorder %s50, 0
      %s53 = sadd.s32 %s52, 1
      %s54 = scalar_select %p51, %s52, %s53
      %p57 = pneg %p51
      %p58 = scmp.eq.s32.totalorder %s16, 1
      %p59 = por %p57, %p58
      %p60 = scmp.ne.s32.totalorder %s52, %s55
      %p61 = scmp.eq.s32.totalorder %s16, 0
      %p62 = por %p60, %p61
      %p63 = scmp.ne.s32.totalorder %s52, %s55
      %p64 = scmp.eq.s32.totalorder %s21, 1
      %p65 = por %p63, %p64
      %p66 = scmp.ne.s32.totalorder %s55, %s56
      %p67 = scmp.eq.s32.totalorder %s21, 0
      %p68 = por %p66, %p67
      %p69 = scmp.ne.s32.totalorder %s55, %s56
      %p70 = scmp.eq.s32.totalorder %s22, 1
      %p71 = por %p69, %p70
      %p73 = scmp.ne.s32.totalorder %s56, %s72
      %p74 = scmp.eq.s32.totalorder %s22, 0
      %p75 = por %p73, %p74
      %s76 = ssub.s32 %s16, %s23
      %p77 = scmp.eq.s32.totalorder %s76, 0
      %s79 = sadd.s32 %s78, 1
      %s80 = scalar_select %p77, %s78, %s79
      %p83 = pneg %p77
      %p84 = scmp.eq.s32.totalorder %s16, 1
      %p85 = por %p83, %p84
      %p86 = scmp.ne.s32.totalorder %s78, %s81
      %p87 = scmp.eq.s32.totalorder %s16, 0
      %p88 = por %p86, %p87
      %p89 = scmp.ne.s32.totalorder %s78, %s81
      %p90 = scmp.eq.s32.totalorder %s21, 1
      %p91 = por %p89, %p90
      %p92 = scmp.ne.s32.totalorder %s81, %s82
      %p93 = scmp.eq.s32.totalorder %s21, 0
      %p94 = por %p92, %p93
      %p95 = scmp.ne.s32.totalorder %s81, %s82
      %p96 = scmp.eq.s32.totalorder %s22, 1
      %p97 = por %p95, %p96
      %p99 = scmp.ne.s32.totalorder %s82, %s98
      %p100 = scmp.eq.s32.totalorder %s22, 0
      %p101 = por %p99, %p100
      %s102 = ssub.s32 %s16, %s23
      %p103 = scmp.eq.s32.totalorder %s102, 0
      %s105 = sadd.s32 %s104, 1
      %s106 = scalar_select %p103, %s104, %s105
      %p109 = pneg %p103
      %p110 = scmp.eq.s32.totalorder %s16, 1
      %p111 = por %p109, %p110
      %p112 = scmp.ne.s32.totalorder %s104, %s107
      %p113 = scmp.eq.s32.totalorder %s16, 0
      %p114 = por %p112, %p113
      %p115 = scmp.ne.s32.totalorder %s104, %s107
      %p116 = scmp.eq.s32.totalorder %s21, 1
      %p117 = por %p115, %p116
      %p118 = scmp.ne.s32.totalorder %s107, %s108
      %p119 = scmp.eq.s32.totalorder %s21, 0
      %p120 = por %p118, %p119
      %p121 = scmp.ne.s32.totalorder %s107, %s108
      %p122 = scmp.eq.s32.totalorder %s22, 1
      %p123 = por %p121, %p122
      %p125 = scmp.ne.s32.totalorder %s108, %s124
      %p126 = scmp.eq.s32.totalorder %s22, 0
      %p127 = por %p125, %p126
      %p128 = scmp.le.s32.totalorder 1, %s16
      %p129 = scmp.lt.s32.totalorder %s16, 3
      %p130 = pnand %p128, %p129
      %p131 = pneg %p130
      // Predicated region
      $region9: #{tpu_custom_call.1} parent=5 // pred_check
        _
      $region10: #{tpu_custom_call.1} parent=5 // pred_check_branch
        %133 = sbr.rel (%p130) target = $region12
      $region11: #{tpu_custom_call.1} parent=5 // pred_region
        %s134 = ssub.s32 %s16, 1
      $region12: #{tpu_custom_call.1} parent=5 // pred_fallthru
        _
      %p135 = scmp.lt.s32.totalorder %s16, 2
      // Predicated region
      $region13: #{tpu_custom_call.1} parent=5 // pred_check
        %p136 = pneg %p135
      $region14: #{tpu_custom_call.1} parent=5 // pred_check_branch
        %138 = sbr.rel (%p136) target = $region16
      $region15: #{tpu_custom_call.1} parent=5 // pred_region
        // Predicated region
        $region17: #{tpu_custom_call.1} parent=15 // pred_check
          %p139 = pneg %p36
        $region18: #{tpu_custom_call.1} parent=15 // pred_check_branch
          %141 = sbr.rel (%p139) target = $region20
        $region19: #{tpu_custom_call.1} parent=15 // pred_region
          %s142 = sand.u32 %s26, 1
          %s143 = scalar_lea.sflag [#allocation3], %s142
          %s144 = sand.u32 %s26, 1
          %s145 = smul.addr %s144, 8
          %s146 = scalar_lea.vmem [#allocation2], %s145
          %s148 = ssub.s32 128, 128
          %149 = vsyncadd %s143, %s148
          %s150 = smul.addr %s16, 128
          %s151 = scalar_lea.hbm %s0, %s150
          %s153 = sshll.u32 %s146, 4
          %s154 = int_to_ptr.vmem [resolvable:$true] %s153
          %156 = dma.hbm_to_vmem [thread:$0]  %s151, 128, %s154, %s143
        $region20: #{tpu_custom_call.1} parent=15 // pred_fallthru
          _
        // Predicated region
        $region21: #{tpu_custom_call.1} parent=15 // pred_check
          %p157 = pneg %p62
        $region22: #{tpu_custom_call.1} parent=15 // pred_check_branch
          %159 = sbr.rel (%p157) target = $region24
        $region23: #{tpu_custom_call.1} parent=15 // pred_region
          %s160 = sand.u32 %s52, 1
          %s161 = scalar_lea.sflag [#allocation5], %s160
          %s162 = sand.u32 %s52, 1
          %s163 = smul.addr %s162, 8
          %s164 = scalar_lea.vmem [#allocation4], %s163
          %s166 = ssub.s32 128, 128
          %167 = vsyncadd %s161, %s166
          %s168 = smul.addr %s16, 128
          %s169 = scalar_lea.hbm %s1, %s168
          %s171 = sshll.u32 %s164, 4
          %s172 = int_to_ptr.vmem [resolvable:$true] %s171
          %174 = dma.hbm_to_vmem [thread:$0]  %s169, 128, %s172, %s161
        $region24: #{tpu_custom_call.1} parent=15 // pred_fallthru
          _
      $region16: #{tpu_custom_call.1} parent=5 // pred_fallthru
        _
      %p175 = scmp.le.s32.totalorder 1, %s16
      %p176 = scmp.lt.s32.totalorder %s16, 3
      %p177 = pnand %p175, %p176
      %p178 = pneg %p177
      // Predicated region
      $region25: #{tpu_custom_call.1} parent=5 // pred_check
        _
      $region26: #{tpu_custom_call.1} parent=5 // pred_check_branch
        %180 = sbr.rel (%p177) target = $region28
      $region27: #{tpu_custom_call.1} parent=5 // pred_region
        %s181 = ssub.s32 %s16, 1
        %s182 = sand.u32 %s29, 1
        %s183 = scalar_lea.sflag [#allocation3], %s182
        %s184 = sand.u32 %s29, 1
        %s185 = smul.addr %s184, 8
        %s186 = scalar_lea.vmem [#allocation2], %s185
        // Predicated region
        $region29: #{tpu_custom_call.1} parent=27 // pred_check
          %p187 = pneg %p42
        $region30: #{tpu_custom_call.1} parent=27 // pred_check_branch
          %189 = sbr.rel (%p187) target = $region32
        $region31: #{tpu_custom_call.1} parent=27 // pred_region
          %190 = dma.done %s183, 128
        $region32: #{tpu_custom_call.1} parent=27 // pred_fallthru
          _
        %s191 = sand.u32 %s55, 1
        %s192 = scalar_lea.sflag [#allocation5], %s191
        %s193 = sand.u32 %s55, 1
        %s194 = smul.addr %s193, 8
        %s195 = scalar_lea.vmem [#allocation4], %s194
        // Predicated region
        $region33: #{tpu_custom_call.1} parent=27 // pred_check
          %p196 = pneg %p68
        $region34: #{tpu_custom_call.1} parent=27 // pred_check_branch
          %198 = sbr.rel (%p196) target = $region36
        $region35: #{tpu_custom_call.1} parent=27 // pred_region
          %199 = dma.done %s192, 128
        $region36: #{tpu_custom_call.1} parent=27 // pred_fallthru
          _
        %s200 = sand.u32 %s29, 1
        %s201 = scalar_lea.sflag [#allocation3], %s200
        %s202 = sand.u32 %s29, 1
        %s203 = smul.addr %s202, 8
        %s204 = scalar_lea.vmem [#allocation2], %s203
        %p205 = pneg %p42
        %p206 = pneg %p39
        %s207 = sand.u32 %s55, 1
        %s208 = scalar_lea.sflag [#allocation5], %s207
        %s209 = sand.u32 %s55, 1
        %s210 = smul.addr %s209, 8
        %s211 = scalar_lea.vmem [#allocation4], %s210
        %p212 = pneg %p68
        %p213 = pneg %p65
        %p214 = pneg %p94
        %p215 = pneg %p91
        %p216 = scmp.lt.s32.totalorder %s21, 1
        %s217 = scalar_select %p216, %s21, 1
        %s218 = smul.addr %s217, 8
        %s219 = scalar_lea.vmem %s2, %s218
        %p220 = pneg %p120
        %p221 = pneg %p117
        %p222 = scmp.lt.s32.totalorder %s21, 1
        %s223 = scalar_select %p222, %s21, 1
        %s224 = smul.addr %s223, 8
        %s225 = scalar_lea.vmem %s3, %s224
        %p226 = scmp.lt.s32.totalorder %s21, 1
        %s227 = scalar_select %p226, %s21, 1
        %s228 = smul.addr %s227, 8
        %s229 = scalar_lea.vmem %s2, %s228
        %p230 = scmp.lt.s32.totalorder %s21, 1
        %s231 = scalar_select %p230, %s21, 1
        %s232 = smul.addr %s231, 8
        %s233 = scalar_lea.vmem %s3, %s232
        %v234 = vld [vmem:[%s186] sm:$0xff]
        %v235 = vld [vmem:[%s195] sm:$0xff]
        %v236 = vmul.f32 %v234, %v234
        %vm237 = vcmask 261120
        %v238 = vsel %vm237, %v236, 0.0
        %239 = vadd.xlane.f32.xlu0 %v238
        %v240 = vpop.xlane.xlu0 %239
        %v241 = vmul.f32 %v235, %v235
        %v242 = vsel %vm237, %v241, 0.0
        %243 = vadd.xlane.f32.xlu0 %v242
        %v244 = vpop.xlane.xlu0 %243
        %v245 = vmul.f32 %v234, %v235
        %v246 = vsel %vm237, %v245, 0.0
        %247 = vadd.xlane.f32.xlu0 %v246
        %v248 = vpop.xlane.xlu0 %247
        %v249 = vsub.f32 %v240, %v236
        %v250 = vmax.f32 %v249, 0.0
        %v251 = vsub.f32 %v244, %v241
        %v252 = vmax.f32 %v251, 0.0
        %v253 = vsub.f32 %v248, %v245
        %v254 = vadd.f32 %v250, 1.0
        %v255 = vrsqrt.pop %v254
        %v256 = vmul.f32 %v254, %v255
        %vm257 = vcmp.eq.f32.partialorder %v254, inf
        %v258 = vsel %vm257, %v254, %v256
        %vm259 = vcmp.eq.f32.partialorder %v254, 0.0
        %v260 = vand.u32 %v254, 2147483648
        %v261 = vsel %vm259, %v260, %v258
        %v262 = vadd.f32 %v252, 1.0
        %v263 = vrsqrt.pop %v262
        %v264 = vmul.f32 %v262, %v263
        %vm265 = vcmp.eq.f32.partialorder %v262, inf
        %v266 = vsel %vm265, %v262, %v264
        %vm267 = vcmp.eq.f32.partialorder %v262, 0.0
        %v268 = vand.u32 %v262, 2147483648
        %v269 = vsel %vm267, %v268, %v266
        %v270 = vmul.f32 %v261, %v269
        %v271 = vsub.f32 %v270, %v253
        %v272 = vsub.f32 %v271, 1.0
        %v273 = vmax.f32 %v272, 1e-07
        %v274 = vadd.f32 %v273, 2.0
        %v275 = vmul.f32 %v273, %v274
        %v276 = vrsqrt.pop %v275
        %v277 = vmul.f32 %v275, %v276
        %vm278 = vcmp.eq.f32.partialorder %v275, inf
        %v279 = vsel %vm278, %v275, %v277
        %vm280 = vcmp.eq.f32.partialorder %v275, 0.0
        %v281 = vand.u32 %v275, 2147483648
        %v282 = vsel %vm280, %v281, %v279
        %v283 = vadd.f32 %v273, %v282
        %v284 = vadd.f32 %v283, 1.0
        %v285 = vlog2.pop %v284
        %v286 = vmul.f32 %v285, 0.6931472
        %vm287 = vcmask 7168
        %288 = vst.msk [vmem:[%s229] sm:$0xff] %vm287, %v286
        %v289 = vlaneseq
        %v290 = vand.u32 %v289, 127
        %v291 = vsub.f32 %v234, %v235
        %v292 = vand.u32 2147483647, %v291
        %v293 = vand.u32 2147483647, %v235
        %v294 = vmul.f32 %v293, 1e-05
        %v295 = vadd.f32 %v294, 1e-07
        %v296 = vsub.f32 %v292, %v295
        %vm297 = vcmp.gt.s32.totalorder %v290, 0
        %v298 = vsel %vm297, %v296, -inf
        %v299 = vsel %vm237, %v298, -inf
        %300 = vmax.xlane.f32.xlu0 %v299
        %v301 = vpop.xlane.xlu0 %300
        %v302 = vsub.f32 %v261, %v269
        %v303 = vand.u32 2147483647, %v302
        %v304 = vmul.f32 %v269, 1e-05
        %v305 = vadd.f32 %v304, 1e-07
        %v306 = vsub.f32 %v303, %v305
        %v307 = vmax.f32 %v301, %v306
        %308 = vst.msk [vmem:[%s233] sm:$0xff] %vm287, %v307
        %p309 = scmp.lt.s32.totalorder %s21, 1
        %s310 = scalar_select %p309, %s21, 1
        %s311 = smul.addr %s310, 8
        %s312 = scalar_lea.vmem %s2, %s311
        %p313 = scmp.lt.s32.totalorder %s21, 1
        %s314 = scalar_select %p313, %s21, 1
        %s315 = smul.addr %s314, 8
        %s316 = scalar_lea.vmem %s3, %s315
        // Predicated region
        $region37: #{tpu_custom_call.1} parent=27 // pred_check
          %p317 = pneg %p91
        $region38: #{tpu_custom_call.1} parent=27 // pred_check_branch
          %319 = sbr.rel (%p317) target = $region40
        $region39: #{tpu_custom_call.1} parent=27 // pred_region
          _
        $region40: #{tpu_custom_call.1} parent=27 // pred_fallthru
          _
        // Predicated region
        $region41: #{tpu_custom_call.1} parent=27 // pred_check
          %p320 = pneg %p117
        $region42: #{tpu_custom_call.1} parent=27 // pred_check_branch
          %322 = sbr.rel (%p320) target = $region44
        $region43: #{tpu_custom_call.1} parent=27 // pred_region
          _
        $region44: #{tpu_custom_call.1} parent=27 // pred_fallthru
          _
      $region28: #{tpu_custom_call.1} parent=5 // pred_fallthru
        _
      %p323 = scmp.le.s32.totalorder 2, %s16
      // Predicated region
      $region45: #{tpu_custom_call.1} parent=5 // pred_check
        %p324 = pneg %p323
      $region46: #{tpu_custom_call.1} parent=5 // pred_check_branch
        %326 = sbr.rel (%p324) target = $region48
      $region47: #{tpu_custom_call.1} parent=5 // pred_region
        %s327 = ssub.s32 %s16, 2
        // Predicated region
        $region49: #{tpu_custom_call.1} parent=47 // pred_check
          %p328 = pneg %p97
        $region50: #{tpu_custom_call.1} parent=47 // pred_check_branch
          %330 = sbr.rel (%p328) target = $region52
        $region51: #{tpu_custom_call.1} parent=47 // pred_region
          %p331 = scmp.lt.s32.totalorder %s22, 1
          %s332 = scalar_select %p331, %s22, 1
          %s333 = smul.addr %s332, 8
          %s334 = scalar_lea.vmem %s2, %s333
        $region52: #{tpu_custom_call.1} parent=47 // pred_fallthru
          _
        // Predicated region
        $region53: #{tpu_custom_call.1} parent=47 // pred_check
          %p335 = pneg %p123
        $region54: #{tpu_custom_call.1} parent=47 // pred_check_branch
          %337 = sbr.rel (%p335) target = $region56
        $region55: #{tpu_custom_call.1} parent=47 // pred_region
          %p338 = scmp.lt.s32.totalorder %s22, 1
          %s339 = scalar_select %p338, %s22, 1
          %s340 = smul.addr %s339, 8
          %s341 = scalar_lea.vmem %s3, %s340
        $region56: #{tpu_custom_call.1} parent=47 // pred_fallthru
          _
      $region48: #{tpu_custom_call.1} parent=5 // pred_fallthru
        _
    $region6: #{tpu_custom_call.1} parent=1 // loop_footer
      %s20 = sadd.s32 1, %s16
    $region7: #{tpu_custom_call.1} parent=1 // loop_footer_branch
      %15 = sbr.rel target = $region3
    $region8: #{tpu_custom_call.1} parent=1 // loop_exit
      _
    %342 = vsyncpa [#allocation3], 1
    %s343 = scalar_lea.sflag [#allocation3], 1
    %344 = vsyncpa %s343, 1
    %345 = vsyncpa [#allocation5], 1
    %s346 = scalar_lea.sflag [#allocation5], 1
    %347 = vsyncpa %s346, 1

</llo_original>
